<compile_context>
chip_gen: v5e
topology: v5e:2x2
jax: 0.10.0
libtpu: 0.0.40
codegen_flags: <defaults>
</compile_context>

<pallas_src>
import functools

import jax
import jax.numpy as jnp
from jax.experimental import pallas as pl
from jax.experimental.pallas import tpu as pltpu

BN_EPS = 1e-5
LANE = 128
SUBLANE = 8


def _round_up(x, m):
    return (x + m - 1) // m * m


def _mlp_kernel(n_layers, bias_offsets, bias_widths, n_classes, apply_logsoftmax,
                x_ref, *refs):
    """Fused MLP forward on one batch tile.

    refs = (w_0, ..., w_{n_layers-1}, packed_biases, o_ref)
    BatchNorm is already folded into the hidden weights/biases; Dropout is
    identity in eval mode.  All shapes are lane-dense (padded to 128).
    """
    w_refs = refs[:n_layers]
    b_ref = refs[n_layers]          # (1, sum of padded output widths)
    o_ref = refs[n_layers + 1]

    h = x_ref[...]
    for l in range(n_layers):
        off, width = bias_offsets[l], bias_widths[l]
        b = b_ref[:, off:off + width]                    # static 128-aligned slice
        z = jnp.dot(h, w_refs[l][...], preferred_element_type=jnp.float32) + b
        if l < n_layers - 1:
            h = jnp.maximum(z, 0.0)                      # ReLU (+ identity Dropout)
        else:
            h = z                                        # output layer: raw logits

    if apply_logsoftmax:
        # Mask padded class lanes before the cross-lane reductions.
        lane_ids = jax.lax.broadcasted_iota(jnp.int32, h.shape, dimension=1)
        logits = jnp.where(lane_ids < n_classes, h, -1e30)
        mx = jnp.max(logits, axis=-1, keepdims=True)
        shifted = logits - mx
        lse = jnp.log(jnp.sum(jnp.exp(shifted), axis=-1, keepdims=True))
        h = shifted - lse

    o_ref[...] = h.astype(o_ref.dtype)


def init_params(key, in_features, out_targets, hidden_layers):
    """PyTorch-default init: Linear U(-1/sqrt(fan_in), +), BN gamma=1, beta=0,
    running_mean=0, running_var=1."""
    params = []
    fan_in = in_features
    for neurons in hidden_layers:
        key, kw, kb = jax.random.split(key, 3)
        bound = 1.0 / jnp.sqrt(float(fan_in))
        params.append(dict(
            w=jax.random.uniform(kw, (fan_in, neurons), jnp.float32, -bound, bound),
            b=jax.random.uniform(kb, (neurons,), jnp.float32, -bound, bound),
            gamma=jnp.ones((neurons,), jnp.float32),
            beta=jnp.zeros((neurons,), jnp.float32),
            mean=jnp.zeros((neurons,), jnp.float32),
            var=jnp.ones((neurons,), jnp.float32),
        ))
        fan_in = neurons
    key, kw, kb = jax.random.split(key, 3)
    bound = 1.0 / jnp.sqrt(float(fan_in))
    params.append(dict(
        w=jax.random.uniform(kw, (fan_in, out_targets), jnp.float32, -bound, bound),
        b=jax.random.uniform(kb, (out_targets,), jnp.float32, -bound, bound),
    ))
    return params


def prepare_fused_params(params):
    """Fold eval-mode BN into the hidden Linears and zero-pad all feature dims
    to multiples of 128.  Biases are concatenated into a single (1, total) array."""
    weights, biases = [], []
    for p in params:
        w, b = p["w"], p["b"]
        if "gamma" in p:  # hidden layer: fold BatchNorm (keeps the rsqrt(1+eps) factor)
            scale = p["gamma"] * jax.lax.rsqrt(p["var"] + BN_EPS)
            w = w * scale[None, :]
            b = (b - p["mean"]) * scale + p["beta"]
        fin_p = _round_up(w.shape[0], LANE)
        fout_p = _round_up(w.shape[1], LANE)
        w_p = jnp.zeros((fin_p, fout_p), jnp.float32).at[:w.shape[0], :w.shape[1]].set(w)
        b_p = jnp.zeros((fout_p,), jnp.float32).at[:b.shape[0]].set(b)
        weights.append(w_p)
        biases.append(b_p)
    bias_widths = tuple(int(b.shape[0]) for b in biases)
    bias_offsets = tuple(int(sum(bias_widths[:i])) for i in range(len(bias_widths)))
    biases_packed = jnp.concatenate(biases)[None, :]  # (1, total), all offsets 128-aligned
    return weights, biases_packed, bias_offsets, bias_widths


def my_neural_network_forward(x, params, out_targets):
    B, in_features = x.shape
    weights, biases, bias_offsets, bias_widths = prepare_fused_params(params)
    n_layers = len(weights)
    fin_pad = weights[0].shape[0]
    c_pad = weights[-1].shape[1]

    # Batch tiling: sublane-aligned tile, 1-D parallel grid over batch rows.
    TB = min(512, _round_up(B, SUBLANE))
    B_pad = _round_up(B, TB)
    x_p = jnp.zeros((B_pad, fin_pad), jnp.float32).at[:B, :in_features].set(x)

    apply_logsoftmax = out_targets > 1
    kernel = functools.partial(_mlp_kernel, n_layers, bias_offsets, bias_widths,
                               out_targets, apply_logsoftmax)

    in_specs = [pl.BlockSpec((TB, fin_pad), lambda i: (i, 0))]
    for w in weights:
        in_specs.append(pl.BlockSpec(w.shape, lambda i: (0, 0)))     # resident weights
    in_specs.append(pl.BlockSpec(biases.shape, lambda i: (0, 0)))    # packed biases
    out_specs = pl.BlockSpec((TB, c_pad), lambda i: (i, 0))

    flops = 2 * B_pad * sum(int(w.shape[0]) * int(w.shape[1]) for w in weights)
    bytes_accessed = 4 * (int(x_p.size) + sum(int(w.size) for w in weights)
                          + int(biases.size) + B_pad * c_pad)
    transcendentals = B_pad * c_pad if apply_logsoftmax else 0

    out_p = pl.pallas_call(
        kernel,
        out_shape=jax.ShapeDtypeStruct((B_pad, c_pad), jnp.float32),
        grid=(B_pad // TB,),
        in_specs=in_specs,
        out_specs=out_specs,
        compiler_params=pltpu.CompilerParams(
            dimension_semantics=("parallel",)),
        cost_estimate=pl.CostEstimate(
            flops=flops,
            transcendentals=transcendentals,
            bytes_accessed=bytes_accessed),
    )(x_p, *weights, biases)

    return out_p[:B, :out_targets]


def _reference_forward(x, params, out_targets):
    """Pure-JAX eval-mode reference for correctness checking."""
    h = x
    for p in params[:-1]:
        z = h @ p["w"] + p["b"]
        z = (z - p["mean"]) * (p["gamma"] * jax.lax.rsqrt(p["var"] + BN_EPS)) + p["beta"]
        h = jnp.maximum(z, 0.0)
    logits = h @ params[-1]["w"] + params[-1]["b"]
    if out_targets > 1:
        return jax.nn.log_softmax(logits, axis=1)
    return logits


if __name__ == "__main__":
    in_features = 16
    out_targets = 4
    hidden_layers = [40, 80, 40]
    batch = 8

    key = jax.random.PRNGKey(0)
    key, kx = jax.random.split(key)
    x = jax.random.normal(kx, (batch, in_features), dtype=jnp.float32)
    params = init_params(key, in_features, out_targets, hidden_layers)

    out = my_neural_network_forward(x, params, out_targets)
    out = jax.block_until_ready(out)

    assert out.shape == (batch, out_targets)
    # LogSoftmax rows exp-sum to 1.
    row_sums = jnp.sum(jnp.exp(out), axis=1)
    assert bool(jnp.all(jnp.abs(row_sums - 1.0) < 1e-4))
    # Match the pure-JAX eval-mode reference (BN folding + padding preserved semantics).
    ref = _reference_forward(x, params, out_targets)
    assert bool(jnp.max(jnp.abs(out - ref)) < 1e-4)

    print("KERNEL_OK")
</pallas_src>

<mosaic_0001>
module attributes {stable_mosaic.version = 11 : i64} {
  func.func @_mlp_kernel(%arg0: i32, %arg1: memref<8x128xf32, #tpu.memory_space<vmem>>, %arg2: memref<128x128xf32, #tpu.memory_space<vmem>>, %arg3: memref<128x128xf32, #tpu.memory_space<vmem>>, %arg4: memref<128x128xf32, #tpu.memory_space<vmem>>, %arg5: memref<128x128xf32, #tpu.memory_space<vmem>>, %arg6: memref<1x512xf32, #tpu.memory_space<vmem>>, %arg7: memref<8x128xf32, #tpu.memory_space<vmem>>) attributes {dimension_semantics = [#tpu.dimension_semantics<parallel>], iteration_bounds = array<i64: 1>, scalar_prefetch = 0 : i64, scratch_operands = 0 : i64, tpu.core_type = #tpu.core_type<tc>, window_params = [{transform_indices = @transform_0, window_bounds = array<i64: 8, 128>}, {pipeline_mode = #tpu.pipeline_mode<synchronous>, transform_indices = @transform_1, window_bounds = array<i64: 128, 128>}, {pipeline_mode = #tpu.pipeline_mode<synchronous>, transform_indices = @transform_2, window_bounds = array<i64: 128, 128>}, {pipeline_mode = #tpu.pipeline_mode<synchronous>, transform_indices = @transform_3, window_bounds = array<i64: 128, 128>}, {pipeline_mode = #tpu.pipeline_mode<synchronous>, transform_indices = @transform_4, window_bounds = array<i64: 128, 128>}, {pipeline_mode = #tpu.pipeline_mode<synchronous>, transform_indices = @transform_5, window_bounds = array<i64: 1, 512>}, {transform_indices = @transform_6, window_bounds = array<i64: 8, 128>}]} {
    %c0 = arith.constant 0 : index
    %c0_0 = arith.constant 0 : index
    %0 = vector.load %arg1[%c0, %c0_0] : memref<8x128xf32, #tpu.memory_space<vmem>>, vector<8x128xf32>
    %c0_1 = arith.constant 0 : index
    %c0_2 = arith.constant 0 : index
    %1 = vector.load %arg6[%c0_1, %c0_2] : memref<1x512xf32, #tpu.memory_space<vmem>>, vector<1x128xf32>
    %c0_3 = arith.constant 0 : index
    %c0_4 = arith.constant 0 : index
    %2 = vector.load %arg2[%c0_3, %c0_4] : memref<128x128xf32, #tpu.memory_space<vmem>>, vector<128x128xf32>
    %cst = arith.constant dense<0.000000e+00> : vector<8x128xf32>
    %3 = tpu.matmul %0, %2, %cst {dimension_numbers = #tpu.dot_dimension_numbers<[1], [0], [0], [1], [0, 0, 1, 1], [], []>} : vector<8x128xf32>, vector<128x128xf32>, vector<8x128xf32> -> vector<8x128xf32>
    %4 = vector.broadcast %1 : vector<1x128xf32> to vector<8x128xf32>
    %5 = arith.addf %3, %4 : vector<8x128xf32>
    %cst_5 = arith.constant 0.000000e+00 : f32
    %6 = vector.broadcast %cst_5 : f32 to vector<8x128xf32>
    %7 = arith.maximumf %5, %6 : vector<8x128xf32>
    %c0_6 = arith.constant 0 : index
    %c128 = arith.constant 128 : index
    %8 = vector.load %arg6[%c0_6, %c128] : memref<1x512xf32, #tpu.memory_space<vmem>>, vector<1x128xf32>
    %c0_7 = arith.constant 0 : index
    %c0_8 = arith.constant 0 : index
    %9 = vector.load %arg3[%c0_7, %c0_8] : memref<128x128xf32, #tpu.memory_space<vmem>>, vector<128x128xf32>
    %cst_9 = arith.constant dense<0.000000e+00> : vector<8x128xf32>
    %10 = tpu.matmul %7, %9, %cst_9 {dimension_numbers = #tpu.dot_dimension_numbers<[1], [0], [0], [1], [0, 0, 1, 1], [], []>} : vector<8x128xf32>, vector<128x128xf32>, vector<8x128xf32> -> vector<8x128xf32>
    %11 = vector.broadcast %8 : vector<1x128xf32> to vector<8x128xf32>
    %12 = arith.addf %10, %11 : vector<8x128xf32>
    %cst_10 = arith.constant 0.000000e+00 : f32
    %13 = vector.broadcast %cst_10 : f32 to vector<8x128xf32>
    %14 = arith.maximumf %12, %13 : vector<8x128xf32>
    %c0_11 = arith.constant 0 : index
    %c256 = arith.constant 256 : index
    %15 = vector.load %arg6[%c0_11, %c256] : memref<1x512xf32, #tpu.memory_space<vmem>>, vector<1x128xf32>
    %c0_12 = arith.constant 0 : index
    %c0_13 = arith.constant 0 : index
    %16 = vector.load %arg4[%c0_12, %c0_13] : memref<128x128xf32, #tpu.memory_space<vmem>>, vector<128x128xf32>
    %cst_14 = arith.constant dense<0.000000e+00> : vector<8x128xf32>
    %17 = tpu.matmul %14, %16, %cst_14 {dimension_numbers = #tpu.dot_dimension_numbers<[1], [0], [0], [1], [0, 0, 1, 1], [], []>} : vector<8x128xf32>, vector<128x128xf32>, vector<8x128xf32> -> vector<8x128xf32>
    %18 = vector.broadcast %15 : vector<1x128xf32> to vector<8x128xf32>
    %19 = arith.addf %17, %18 : vector<8x128xf32>
    %cst_15 = arith.constant 0.000000e+00 : f32
    %20 = vector.broadcast %cst_15 : f32 to vector<8x128xf32>
    %21 = arith.maximumf %19, %20 : vector<8x128xf32>
    %c0_16 = arith.constant 0 : index
    %c384 = arith.constant 384 : index
    %22 = vector.load %arg6[%c0_16, %c384] : memref<1x512xf32, #tpu.memory_space<vmem>>, vector<1x128xf32>
    %c0_17 = arith.constant 0 : index
    %c0_18 = arith.constant 0 : index
    %23 = vector.load %arg5[%c0_17, %c0_18] : memref<128x128xf32, #tpu.memory_space<vmem>>, vector<128x128xf32>
    %cst_19 = arith.constant dense<0.000000e+00> : vector<8x128xf32>
    %24 = tpu.matmul %21, %23, %cst_19 {dimension_numbers = #tpu.dot_dimension_numbers<[1], [0], [0], [1], [0, 0, 1, 1], [], []>} : vector<8x128xf32>, vector<128x128xf32>, vector<8x128xf32> -> vector<8x128xf32>
    %25 = vector.broadcast %22 : vector<1x128xf32> to vector<8x128xf32>
    %26 = arith.addf %24, %25 : vector<8x128xf32>
    %27 = tpu.iota {dimensions = array<i32: 1>} : vector<8x128xi32>
    %c4_i32 = arith.constant 4 : i32
    %28 = vector.broadcast %c4_i32 : i32 to vector<8x128xi32>
    %29 = arith.cmpi slt, %27, %28 : vector<8x128xi32>
    %cst_20 = arith.constant -1.000000e+30 : f32
    %30 = vector.broadcast %cst_20 : f32 to vector<8x128xf32>
    %31 = arith.select %29, %26, %30 : vector<8x128xi1>, vector<8x128xf32>
    %cst_21 = arith.constant dense<0xFF800000> : vector<8xf32>
    %32 = vector.multi_reduction <maximumf>, %31, %cst_21 [1] : vector<8x128xf32> to vector<8xf32>
    %33 = vector.shape_cast %32 : vector<8xf32> to vector<8x1xf32>
    %34 = vector.broadcast %33 : vector<8x1xf32> to vector<8x128xf32>
    %35 = arith.subf %31, %34 : vector<8x128xf32>
    %36 = math.exp %35 : vector<8x128xf32>
    %cst_22 = arith.constant dense<0.000000e+00> : vector<8xf32>
    %37 = vector.multi_reduction <add>, %36, %cst_22 [1] : vector<8x128xf32> to vector<8xf32>
    %38 = vector.shape_cast %37 : vector<8xf32> to vector<8x1xf32>
    %39 = math.log %38 : vector<8x1xf32>
    %40 = vector.broadcast %39 : vector<8x1xf32> to vector<8x128xf32>
    %41 = arith.subf %35, %40 : vector<8x128xf32>
    %c0_23 = arith.constant 0 : index
    %c0_24 = arith.constant 0 : index
    %42 = vector.load %arg7[%c0_23, %c0_24] : memref<8x128xf32, #tpu.memory_space<vmem>>, vector<8x128xf32>
    tpu.vector_store %arg7[%c0_23, %c0_24], %41 {strides = array<i32>} : memref<8x128xf32, #tpu.memory_space<vmem>>, vector<8x128xf32>,
    return
  }
  func.func @transform_0(%arg0: i32) -> (i32, i32) {
    %c0_i32 = arith.constant 0 : i32
    %c0_i32_0 = arith.constant 0 : i32
    return %arg0, %c0_i32 : i32, i32
  }
  func.func @transform_1(%arg0: i32) -> (i32, i32) {
    %c0_i32 = arith.constant 0 : i32
    %c0_i32_0 = arith.constant 0 : i32
    %c0_i32_1 = arith.constant 0 : i32
    return %c0_i32, %c0_i32_0 : i32, i32
  }
  func.func @transform_2(%arg0: i32) -> (i32, i32) {
    %c0_i32 = arith.constant 0 : i32
    %c0_i32_0 = arith.constant 0 : i32
    %c0_i32_1 = arith.constant 0 : i32
    return %c0_i32, %c0_i32_0 : i32, i32
  }
  func.func @transform_3(%arg0: i32) -> (i32, i32) {
    %c0_i32 = arith.constant 0 : i32
    %c0_i32_0 = arith.constant 0 : i32
    %c0_i32_1 = arith.constant 0 : i32
    return %c0_i32, %c0_i32_0 : i32, i32
  }
  func.func @transform_4(%arg0: i32) -> (i32, i32) {
    %c0_i32 = arith.constant 0 : i32
    %c0_i32_0 = arith.constant 0 : i32
    %c0_i32_1 = arith.constant 0 : i32
    return %c0_i32, %c0_i32_0 : i32, i32
  }
  func.func @transform_5(%arg0: i32) -> (i32, i32) {
    %c0_i32 = arith.constant 0 : i32
    %c0_i32_0 = arith.constant 0 : i32
    %c0_i32_1 = arith.constant 0 : i32
    return %c0_i32, %c0_i32_0 : i32, i32
  }
  func.func @transform_6(%arg0: i32) -> (i32, i32) {
    %c0_i32 = arith.constant 0 : i32
    %c0_i32_0 = arith.constant 0 : i32
    return %arg0, %c0_i32 : i32, i32
  }
}

</mosaic_0001>

<llo_original>
// kernel: tpu_custom_call.1
$region0: #{tpu_custom_call.1}
  #allocation0 [shape = 'u32[]', space=smem, size = 0x4, offset = 0x4, fixed_abs, tag = 'smem constant byte address 0x4 - core index']
  #allocation1 [shape = 'u32[72,128]{1,0:T(1,128)}', space=vmem, size = 0x9000, scoped, tag = 'internal scratch']
  %s0 = inlined_call_operand.hbm [shape: f32[8,128], index: 0, kind: input, shape index: {}]
  %s1 = inlined_call_operand.hbm [shape: f32[128,128], index: 1, kind: input, shape index: {}]
  %s2 = inlined_call_operand.hbm [shape: f32[128,128], index: 2, kind: input, shape index: {}]
  %s3 = inlined_call_operand.hbm [shape: f32[128,128], index: 3, kind: input, shape index: {}]
  %s4 = inlined_call_operand.hbm [shape: f32[128,128], index: 4, kind: input, shape index: {}]
  %s5 = inlined_call_operand.vmem [shape: f32[1,512], index: 5, kind: input, shape index: {}]
  %s6 = inlined_call_operand.hbm [shape: f32[8,128], index: 6, kind: output, shape index: {}]
  %s7 = sld [smem:[#allocation0]]
  $region54: #{tpu_custom_call.1} parent=0
    _
  %s9 = ssub.s32 1, %s7
  %s10 = scalar_select 0, %s9, %s7
  $region1: #{tpu_custom_call.1} parent=0
    #allocation2 [shape = 'u8[4096]{0}', space=vmem, size = 0x1000, scoped, tag = 'input window, operand 0, single buffered']
    #allocation3 [shape = 's32[1]{0}', space=sflag, size = 0x4, scoped, tag = 'scoped memory for tpu_custom_call.1']
    #allocation4 [shape = 's32[1]{0}', space=sflag, size = 0x4, scoped, tag = 'scoped memory for tpu_custom_call.1']
    #allocation5 [shape = 'u8[65536]{0}', space=vmem, size = 0x10000, scoped, tag = 'input window, operand 1, single buffered']
    #allocation6 [shape = 's32[1]{0}', space=sflag, size = 0x4, scoped, tag = 'scoped memory for tpu_custom_call.1']
    #allocation7 [shape = 'u8[65536]{0}', space=vmem, size = 0x10000, scoped, tag = 'input window, operand 2, single buffered']
    #allocation8 [shape = 'u8[65536]{0}', space=vmem, size = 0x10000, scoped, tag = 'input window, operand 3, single buffered']
    #allocation9 [shape = 's32[1]{0}', space=sflag, size = 0x4, scoped, tag = 'scoped memory for tpu_custom_call.1']
    #allocation10 [shape = 'u8[65536]{0}', space=vmem, size = 0x10000, scoped, tag = 'input window, operand 4, single buffered']
    #allocation11 [shape = 'u8[4096]{0}', space=vmem, size = 0x1000, scoped, tag = 'output window, operand 0, single buffered']
    %11 = vsyncpa [#allocation3], 0
    %12 = vsyncpa [#allocation6], 0
    %13 = vsyncpa [#allocation9], 0
    %14 = vsyncpa [#allocation4], 0
    // Predicated region
    $region2: #{tpu_custom_call.1} parent=1 // pred_check
      _
    $region3: #{tpu_custom_call.1} parent=1 // pred_check_branch
      %16 = sbr.rel (0) target = $region5
    $region4: #{tpu_custom_call.1} parent=1 // pred_region
      %18 = vsyncadd [#allocation3], 0
      %s20 = sshll.u32 %s0, 4
      %s21 = int_to_ptr.hbm [resolvable:$true] %s20
      %s22 = sshll.u32 [#allocation2], 4
      %s23 = int_to_ptr.vmem [resolvable:$true] %s22
      %25 = dma.hbm_to_vmem [thread:$0]  %s21, 128, %s23, [#allocation3]
    $region5: #{tpu_custom_call.1} parent=1 // pred_fallthru
      _
    // Predicated region
    $region6: #{tpu_custom_call.1} parent=1 // pred_check
      _
    $region7: #{tpu_custom_call.1} parent=1 // pred_check_branch
      %27 = sbr.rel (0) target = $region9
    $region8: #{tpu_custom_call.1} parent=1 // pred_region
      %29 = vsyncadd [#allocation6], 0
      %s30 = sshll.u32 %s1, 4
      %s31 = int_to_ptr.hbm [resolvable:$true] %s30
      %s32 = sshll.u32 [#allocation5], 4
      %s33 = int_to_ptr.vmem [resolvable:$true] %s32
      %38 = dma.hbm_to_vmem [thread:$0]  %s31, 2048, %s33, [#allocation6], 128, 128, 8
    $region9: #{tpu_custom_call.1} parent=1 // pred_fallthru
      _
    // Predicated region
    $region10: #{tpu_custom_call.1} parent=1 // pred_check
      _
    $region11: #{tpu_custom_call.1} parent=1 // pred_check_branch
      %40 = sbr.rel (0) target = $region13
    $region12: #{tpu_custom_call.1} parent=1 // pred_region
      %42 = vsyncadd [#allocation6], 0
      %s43 = sshll.u32 %s2, 4
      %s44 = int_to_ptr.hbm [resolvable:$true] %s43
      %s45 = sshll.u32 [#allocation7], 4
      %s46 = int_to_ptr.vmem [resolvable:$true] %s45
      %51 = dma.hbm_to_vmem [thread:$0]  %s44, 2048, %s46, [#allocation6], 128, 128, 8
    $region13: #{tpu_custom_call.1} parent=1 // pred_fallthru
      _
    // Predicated region
    $region14: #{tpu_custom_call.1} parent=1 // pred_check
      _
    $region15: #{tpu_custom_call.1} parent=1 // pred_check_branch
      %53 = sbr.rel (0) target = $region17
    $region16: #{tpu_custom_call.1} parent=1 // pred_region
      %55 = vsyncadd [#allocation9], 0
      %s56 = sshll.u32 %s3, 4
      %s57 = int_to_ptr.hbm [resolvable:$true] %s56
      %s58 = sshll.u32 [#allocation8], 4
      %s59 = int_to_ptr.vmem [resolvable:$true] %s58
      %64 = dma.hbm_to_vmem [thread:$0]  %s57, 2048, %s59, [#allocation9], 128, 128, 8
    $region17: #{tpu_custom_call.1} parent=1 // pred_fallthru
      _
    // Predicated region
    $region18: #{tpu_custom_call.1} parent=1 // pred_check
      _
    $region19: #{tpu_custom_call.1} parent=1 // pred_check_branch
      %66 = sbr.rel (0) target = $region21
    $region20: #{tpu_custom_call.1} parent=1 // pred_region
      %68 = vsyncadd [#allocation9], 0
      %s69 = sshll.u32 %s4, 4
      %s70 = int_to_ptr.hbm [resolvable:$true] %s69
      %s71 = sshll.u32 [#allocation10], 4
      %s72 = int_to_ptr.vmem [resolvable:$true] %s71
      %77 = dma.hbm_to_vmem [thread:$0]  %s70, 2048, %s72, [#allocation9], 128, 128, 8
    $region21: #{tpu_custom_call.1} parent=1 // pred_fallthru
      _
    // Predicated region
    $region22: #{tpu_custom_call.1} parent=1 // pred_check
      _
    $region23: #{tpu_custom_call.1} parent=1 // pred_check_branch
      %79 = sbr.rel (0) target = $region25
    $region24: #{tpu_custom_call.1} parent=1 // pred_region
      _
    $region25: #{tpu_custom_call.1} parent=1 // pred_fallthru
      _
    // Predicated region
    $region26: #{tpu_custom_call.1} parent=1 // pred_check
      _
    $region27: #{tpu_custom_call.1} parent=1 // pred_check_branch
      %81 = sbr.rel (0) target = $region29
    $region28: #{tpu_custom_call.1} parent=1 // pred_region
      %83 = dma.done [#allocation3], 128
    $region29: #{tpu_custom_call.1} parent=1 // pred_fallthru
      _
    // Predicated region
    $region30: #{tpu_custom_call.1} parent=1 // pred_check
      _
    $region31: #{tpu_custom_call.1} parent=1 // pred_check_branch
      %85 = sbr.rel (0) target = $region33
    $region32: #{tpu_custom_call.1} parent=1 // pred_region
      %87 = dma.done [#allocation6], 2048
    $region33: #{tpu_custom_call.1} parent=1 // pred_fallthru
      _
    // Predicated region
    $region34: #{tpu_custom_call.1} parent=1 // pred_check
      _
    $region35: #{tpu_custom_call.1} parent=1 // pred_check_branch
      %89 = sbr.rel (0) target = $region37
    $region36: #{tpu_custom_call.1} parent=1 // pred_region
      %91 = dma.done [#allocation6], 2048
    $region37: #{tpu_custom_call.1} parent=1 // pred_fallthru
      _
    // Predicated region
    $region38: #{tpu_custom_call.1} parent=1 // pred_check
      _
    $region39: #{tpu_custom_call.1} parent=1 // pred_check_branch
      %93 = sbr.rel (0) target = $region41
    $region40: #{tpu_custom_call.1} parent=1 // pred_region
      %95 = dma.done [#allocation9], 2048
    $region41: #{tpu_custom_call.1} parent=1 // pred_fallthru
      _
    // Predicated region
    $region42: #{tpu_custom_call.1} parent=1 // pred_check
      _
    $region43: #{tpu_custom_call.1} parent=1 // pred_check_branch
      %97 = sbr.rel (0) target = $region45
    $region44: #{tpu_custom_call.1} parent=1 // pred_region
      %99 = dma.done [#allocation9], 2048
    $region45: #{tpu_custom_call.1} parent=1 // pred_fallthru
      _
    %v100 = vld [vmem:[#allocation2] sm:$0xff]
    %v101 = vld [vmem:[%s5] sm:$0x1]
    %v102 = vld [vmem:[#allocation5] sm:$0xff]
    %v103 = vld [vmem:[#allocation5 + $0x8] sm:$0xff]
    %v104 = vld [vmem:[#allocation5 + $0x10] sm:$0xff]
    %v105 = vld [vmem:[#allocation5 + $0x18] sm:$0xff]
    %v106 = vld [vmem:[#allocation5 + $0x20] sm:$0xff]
    %v107 = vld [vmem:[#allocation5 + $0x28] sm:$0xff]
    %v108 = vld [vmem:[#allocation5 + $0x30] sm:$0xff]
    %v109 = vld [vmem:[#allocation5 + $0x38] sm:$0xff]
    %v110 = vld [vmem:[#allocation5 + $0x40] sm:$0xff]
    %v111 = vld [vmem:[#allocation5 + $0x48] sm:$0xff]
    %v112 = vld [vmem:[#allocation5 + $0x50] sm:$0xff]
    %v113 = vld [vmem:[#allocation5 + $0x58] sm:$0xff]
    %v114 = vld [vmem:[#allocation5 + $0x60] sm:$0xff]
    %v115 = vld [vmem:[#allocation5 + $0x68] sm:$0xff]
    %v116 = vld [vmem:[#allocation5 + $0x70] sm:$0xff]
    %v117 = vld [vmem:[#allocation5 + $0x78] sm:$0xff]
    %v119 = vperm.slane %v101, 0
    %121 = vmatpush.msra.mxu0 %v117
    %122 = vmatpush.msra.mxu0 %v116
    %123 = vmatpush.msra.mxu0 %v115
    %124 = vmatpush.msra.mxu0 %v114
    %125 = vmatpush.msra.mxu0 %v113
    %126 = vmatpush.msra.mxu0 %v112
    %127 = vmatpush.msra.mxu0 %v111
    %128 = vmatpush.msra.mxu0 %v110
    %129 = vmatpush.msra.mxu0 %v109
    %130 = vmatpush.msra.mxu0 %v108
    %131 = vmatpush.msra.mxu0 %v107
    %132 = vmatpush.msra.mxu0 %v106
    %133 = vmatpush.msra.mxu0 %v105
    %134 = vmatpush.msra.mxu0 %v104
    %135 = vmatpush.msra.mxu0 %v103
    %136 = vmatpush.msra.mxu0 %v102
    %137 = vmatmul.f32.gmra.mxu0 %v100
    %v138 = vpop.f32.mrf.mxu0
    %v139 = vadd.f32 %v119, %v138
    %140 = vdwg.mxu0
    %v141 = vmax.f32 %v139, 0.0
    %v142 = vld [vmem:[%s5 + $0x1] sm:$0x1]
    %v143 = vld [vmem:[#allocation7] sm:$0xff]
    %v144 = vld [vmem:[#allocation7 + $0x8] sm:$0xff]
    %v145 = vld [vmem:[#allocation7 + $0x10] sm:$0xff]
    %v146 = vld [vmem:[#allocation7 + $0x18] sm:$0xff]
    %v147 = vld [vmem:[#allocation7 + $0x20] sm:$0xff]
    %v148 = vld [vmem:[#allocation7 + $0x28] sm:$0xff]
    %v149 = vld [vmem:[#allocation7 + $0x30] sm:$0xff]
    %v150 = vld [vmem:[#allocation7 + $0x38] sm:$0xff]
    %v151 = vld [vmem:[#allocation7 + $0x40] sm:$0xff]
    %v152 = vld [vmem:[#allocation7 + $0x48] sm:$0xff]
    %v153 = vld [vmem:[#allocation7 + $0x50] sm:$0xff]
    %v154 = vld [vmem:[#allocation7 + $0x58] sm:$0xff]
    %v155 = vld [vmem:[#allocation7 + $0x60] sm:$0xff]
    %v156 = vld [vmem:[#allocation7 + $0x68] sm:$0xff]
    %v157 = vld [vmem:[#allocation7 + $0x70] sm:$0xff]
    %v158 = vld [vmem:[#allocation7 + $0x78] sm:$0xff]
    %v160 = vperm.slane %v142, 0
    %162 = vmatpush.msra.mxu0 %v158
    %163 = vmatpush.msra.mxu0 %v157
    %164 = vmatpush.msra.mxu0 %v156
    %165 = vmatpush.msra.mxu0 %v155
    %166 = vmatpush.msra.mxu0 %v154
    %167 = vmatpush.msra.mxu0 %v153
    %168 = vmatpush.msra.mxu0 %v152
    %169 = vmatpush.msra.mxu0 %v151
    %170 = vmatpush.msra.mxu0 %v150
    %171 = vmatpush.msra.mxu0 %v149
    %172 = vmatpush.msra.mxu0 %v148
    %173 = vmatpush.msra.mxu0 %v147
    %174 = vmatpush.msra.mxu0 %v146
    %175 = vmatpush.msra.mxu0 %v145
    %176 = vmatpush.msra.mxu0 %v144
    %177 = vmatpush.msra.mxu0 %v143
    %178 = vmatmul.f32.gmra.mxu0 %v141
    %v179 = vpop.f32.mrf.mxu0
    %v180 = vadd.f32 %v160, %v179
    %181 = vdwg.mxu0
    %v182 = vmax.f32 %v180, 0.0
    %v183 = vld [vmem:[%s5 + $0x2] sm:$0x1]
    %v184 = vld [vmem:[#allocation8] sm:$0xff]
    %v185 = vld [vmem:[#allocation8 + $0x8] sm:$0xff]
    %v186 = vld [vmem:[#allocation8 + $0x10] sm:$0xff]
    %v187 = vld [vmem:[#allocation8 + $0x18] sm:$0xff]
    %v188 = vld [vmem:[#allocation8 + $0x20] sm:$0xff]
    %v189 = vld [vmem:[#allocation8 + $0x28] sm:$0xff]
    %v190 = vld [vmem:[#allocation8 + $0x30] sm:$0xff]
    %v191 = vld [vmem:[#allocation8 + $0x38] sm:$0xff]
    %v192 = vld [vmem:[#allocation8 + $0x40] sm:$0xff]
    %v193 = vld [vmem:[#allocation8 + $0x48] sm:$0xff]
    %v194 = vld [vmem:[#allocation8 + $0x50] sm:$0xff]
    %v195 = vld [vmem:[#allocation8 + $0x58] sm:$0xff]
    %v196 = vld [vmem:[#allocation8 + $0x60] sm:$0xff]
    %v197 = vld [vmem:[#allocation8 + $0x68] sm:$0xff]
    %v198 = vld [vmem:[#allocation8 + $0x70] sm:$0xff]
    %v199 = vld [vmem:[#allocation8 + $0x78] sm:$0xff]
    %v201 = vperm.slane %v183, 0
    %203 = vmatpush.msra.mxu0 %v199
    %204 = vmatpush.msra.mxu0 %v198
    %205 = vmatpush.msra.mxu0 %v197
    %206 = vmatpush.msra.mxu0 %v196
    %207 = vmatpush.msra.mxu0 %v195
    %208 = vmatpush.msra.mxu0 %v194
    %209 = vmatpush.msra.mxu0 %v193
    %210 = vmatpush.msra.mxu0 %v192
    %211 = vmatpush.msra.mxu0 %v191
    %212 = vmatpush.msra.mxu0 %v190
    %213 = vmatpush.msra.mxu0 %v189
    %214 = vmatpush.msra.mxu0 %v188
    %215 = vmatpush.msra.mxu0 %v187
    %216 = vmatpush.msra.mxu0 %v186
    %217 = vmatpush.msra.mxu0 %v185
    %218 = vmatpush.msra.mxu0 %v184
    %219 = vmatmul.f32.gmra.mxu0 %v182
    %v220 = vpop.f32.mrf.mxu0
    %v221 = vadd.f32 %v201, %v220
    %222 = vdwg.mxu0
    %v223 = vmax.f32 %v221, 0.0
    %v224 = vld [vmem:[%s5 + $0x3] sm:$0x1]
    %v225 = vld [vmem:[#allocation10] sm:$0xff]
    %v226 = vld [vmem:[#allocation10 + $0x8] sm:$0xff]
    %v227 = vld [vmem:[#allocation10 + $0x10] sm:$0xff]
    %v228 = vld [vmem:[#allocation10 + $0x18] sm:$0xff]
    %v229 = vld [vmem:[#allocation10 + $0x20] sm:$0xff]
    %v230 = vld [vmem:[#allocation10 + $0x28] sm:$0xff]
    %v231 = vld [vmem:[#allocation10 + $0x30] sm:$0xff]
    %v232 = vld [vmem:[#allocation10 + $0x38] sm:$0xff]
    %v233 = vld [vmem:[#allocation10 + $0x40] sm:$0xff]
    %v234 = vld [vmem:[#allocation10 + $0x48] sm:$0xff]
    %v235 = vld [vmem:[#allocation10 + $0x50] sm:$0xff]
    %v236 = vld [vmem:[#allocation10 + $0x58] sm:$0xff]
    %v237 = vld [vmem:[#allocation10 + $0x60] sm:$0xff]
    %v238 = vld [vmem:[#allocation10 + $0x68] sm:$0xff]
    %v239 = vld [vmem:[#allocation10 + $0x70] sm:$0xff]
    %v240 = vld [vmem:[#allocation10 + $0x78] sm:$0xff]
    %v242 = vperm.slane %v224, 0
    %244 = vmatpush.msra.mxu0 %v240
    %245 = vmatpush.msra.mxu0 %v239
    %246 = vmatpush.msra.mxu0 %v238
    %247 = vmatpush.msra.mxu0 %v237
    %248 = vmatpush.msra.mxu0 %v236
    %249 = vmatpush.msra.mxu0 %v235
    %250 = vmatpush.msra.mxu0 %v234
    %251 = vmatpush.msra.mxu0 %v233
    %252 = vmatpush.msra.mxu0 %v232
    %253 = vmatpush.msra.mxu0 %v231
    %254 = vmatpush.msra.mxu0 %v230
    %255 = vmatpush.msra.mxu0 %v229
    %256 = vmatpush.msra.mxu0 %v228
    %257 = vmatpush.msra.mxu0 %v227
    %258 = vmatpush.msra.mxu0 %v226
    %259 = vmatpush.msra.mxu0 %v225
    %260 = vmatmul.f32.gmra.mxu0 %v223
    %v261 = vpop.f32.mrf.mxu0
    %v262 = vadd.f32 %v242, %v261
    %263 = vdwg.mxu0
    %v264 = vlaneseq
    %v265 = vand.u32 %v264, 127
    %vm266 = vcmp.lt.s32.totalorder %v265, 4
    %v267 = vsel %vm266, %v262, -1e+30
    %268 = vmax.xlane.f32.xlu0 %v267
    %v269 = vpop.xlane.xlu0 %268
    %v270 = vsub.f32 %v267, %v269
    %v271 = vmul.f32 %v270, 1.442695
    %v272 = vpow.pop %v271
    %273 = vadd.xlane.f32.xlu0 %v272
    %v274 = vpop.xlane.xlu0 %273
    %v275 = vlog2.pop %v274
    %v276 = vmul.f32 %v275, 0.6931472
    %v277 = vsub.f32 %v270, %v276
    %278 = vst [vmem:[#allocation11] sm:$0xff] %v277
    // Predicated region
    $region46: #{tpu_custom_call.1} parent=1 // pred_check
      _
    $region47: #{tpu_custom_call.1} parent=1 // pred_check_branch
      %280 = sbr.rel (0) target = $region49
    $region48: #{tpu_custom_call.1} parent=1 // pred_region
      %282 = vsyncadd [#allocation4], 0
      %s284 = sshll.u32 [#allocation11], 4
      %s285 = int_to_ptr.vmem [resolvable:$true] %s284
      %s286 = sshll.u32 %s6, 4
      %s287 = int_to_ptr.hbm [resolvable:$true] %s286
      %289 = dma.vmem_to_hbm [thread:$0]  %s285, 128, %s287, [#allocation4]
    $region49: #{tpu_custom_call.1} parent=1 // pred_fallthru
      _
    // Predicated region
    $region50: #{tpu_custom_call.1} parent=1 // pred_check
      _
    $region51: #{tpu_custom_call.1} parent=1 // pred_check_branch
      %291 = sbr.rel (0) target = $region53
    $region52: #{tpu_custom_call.1} parent=1 // pred_region
      %293 = dma.done [#allocation4], 128
    $region53: #{tpu_custom_call.1} parent=1 // pred_fallthru
      _
    %294 = vsyncpa [#allocation3], 1
    %295 = vsyncpa [#allocation6], 1
    %296 = vsyncpa [#allocation9], 1
    %297 = vsyncpa [#allocation4], 1

</llo_original>
